<compile_context>
chip_gen: v6e
topology: v6e:2x2x1
jax: 0.10.0
libtpu: 0.0.40
codegen_flags: <defaults>
</compile_context>

<pallas_src>
import functools

import jax
import jax.numpy as jnp
from jax.experimental import pallas as pl
from jax.experimental.pallas import tpu as pltpu


# ---------------------------------------------------------------------------
# Pallas kernel: fused global-average-pool + 1x1 conv (matmul) + bias
# ---------------------------------------------------------------------------

def _pool_linear_kernel(x_ref, w_ref, b_ref, o_ref, acc_ref, *, true_s, need_mask):
    h = pl.program_id(0)            # spatial-split index (megacore work split)
    si = pl.program_id(2)           # spatial tile index within this split
    spt = pl.num_programs(2)

    @pl.when(si == 0)
    def _():
        acc_ref[...] = jnp.zeros_like(acc_ref)

    x = x_ref[...].astype(jnp.float32)          # (tile_n, C, tile_s)
    if need_mask:
        # Mask out-of-range spatial columns (ragged last tile / phantom tile
        # of the split).  Positions are computed from the *logical* tile index
        # h*spt + si, so a clamped phantom DMA contributes exactly zero.
        tile_s = x_ref.shape[-1]
        base = (h * spt + si) * tile_s
        pos = jax.lax.broadcasted_iota(jnp.int32, x.shape, 2) + base
        x = jnp.where(pos < true_s, x, 0.0)

    acc_ref[...] += jnp.sum(x, axis=-1)         # partial spatial sum -> (tile_n, C)

    @pl.when(si == spt - 1)
    def _():
        pooled = acc_ref[...] * (1.0 / float(true_s))       # mean over H*W
        y = jnp.dot(pooled, w_ref[...], preferred_element_type=jnp.float32)
        # Add the bias only on split 0 (splits are summed outside the kernel).
        bias = jnp.where(h == 0, 1.0, 0.0) * b_ref[...]
        o_ref[...] = (y + bias).astype(o_ref.dtype)


def _pool_linear(x_nchw, w, b, *, max_tile_s=None):
    """mean over (H, W) of x_nchw, then @ w + b.   x: (N, C, H, W); w: (C, c2)."""
    N, C, H, W = x_nchw.shape
    c2 = w.shape[1]
    S = H * W

    # Free view of NCHW: (N, C, H*W).  Channels on sublanes, spatial on lanes.
    x3 = x_nchw.reshape(N, C, S)
    item = jnp.dtype(x3.dtype).itemsize

    # Batch tile (leading block dim -> no (8,128) constraint).
    tile_n = N if N <= 128 else 128
    n_batch = pl.cdiv(N, tile_n)

    # ---- VMEM budget, derived from the actual chip generation -------------
    try:
        vmem_cap = int(pltpu.get_tpu_info().vmem_capacity_bytes)
    except Exception:
        vmem_cap = 64 * 1024 * 1024
    usable = min(int(vmem_cap * 0.65), vmem_cap - (16 << 20))
    usable = max(usable, 8 << 20)

    # Resident footprint: weight+bias (double-buffered by the pipeline),
    # output block (double-buffered), f32 accumulator.
    # TODO(synk): if C*c2 ever becomes too large for VMEM, the weight would
    # need its own c2 tiling; typical Classify sizes (<=1280x1000) fit easily.
    fixed = 2 * (C * c2 + c2) * 4 + 2 * tile_n * c2 * 4 + tile_n * C * 4
    per_block = max((usable - fixed) // 2, 0)           # double-buffered x block
    cap_s = per_block // max(1, tile_n * C * item)
    if max_tile_s is not None:
        cap_s = min(cap_s, max_tile_s)
    if S <= max(cap_s, 128):
        tile_s = S                                      # full dim: no 128 constraint
    else:
        tile_s = max(128, (cap_s // 128) * 128)         # lane-aligned tile

    s_tiles = pl.cdiv(S, tile_s)
    # Give the second TensorCore (v7x) work when the batch grid is trivial.
    n_splits = 2 if (n_batch == 1 and s_tiles >= 2) else 1
    spt = pl.cdiv(s_tiles, n_splits)
    need_mask = (n_splits * spt * tile_s) != S
    last_blk = s_tiles - 1

    est = fixed + 2 * tile_n * C * tile_s * item + (2 << 20)
    vmem_limit = int(min(vmem_cap - (2 << 20), max(usable, est)))

    kern = functools.partial(_pool_linear_kernel, true_s=S, need_mask=need_mask)

    cost = pl.CostEstimate(
        flops=int(N * C * S + 2 * N * C * c2),
        transcendentals=0,
        bytes_accessed=int(N * C * S * item + (C * c2 + c2) * 4
                           + n_splits * N * c2 * 4),
    )

    parts = pl.pallas_call(
        kern,
        out_shape=jax.ShapeDtypeStruct((n_splits, N, c2), jnp.float32),
        grid=(n_splits, n_batch, spt),
        in_specs=[
            pl.BlockSpec(
                (tile_n, C, tile_s),
                lambda h, ni, si: (ni, 0, jnp.minimum(h * spt + si, last_blk))),
            pl.BlockSpec((C, c2), lambda h, ni, si: (0, 0)),   # weight resident
            pl.BlockSpec((1, c2), lambda h, ni, si: (0, 0)),   # bias resident
        ],
        out_specs=pl.BlockSpec((None, tile_n, c2), lambda h, ni, si: (h, ni, 0)),
        scratch_shapes=[pltpu.VMEM((tile_n, C), jnp.float32)],
        compiler_params=pltpu.CompilerParams(
            dimension_semantics=("parallel", "parallel", "arbitrary"),
            vmem_limit_bytes=vmem_limit),
        cost_estimate=cost,
    )(x3, w, b.reshape(1, c2))

    if n_splits == 1:
        return parts[0]
    return parts.sum(axis=0)        # combine the two spatial halves (tiny op)


# ---------------------------------------------------------------------------
# Classify forward
# ---------------------------------------------------------------------------

def classify_forward(x, w, b, *, _max_tile_s=None):
    """Classify.forward.

    x: (N, c1, H, W) array, or a list of (N, ci, Hi, Wi) with sum(ci) == c1
       (matching torch.cat of the pooled features along channels).
    w: (c1, c2) 1x1-conv weight (conv weight (c2, c1, 1, 1) transposed/squeezed).
    b: (c2,) conv bias.
    Returns (N, c2).
    """
    # TODO(synk): k>1 / s>1 / groups>1 conv variants are not implemented
    # (module defaults k=1, s=1, g=1 reduce exactly to a linear layer).
    xs = list(x) if isinstance(x, (list, tuple)) else [x]
    out = None
    off = 0
    for i, xi in enumerate(xs):
        ci = xi.shape[1]
        wi = w[off:off + ci]                      # channel slice of the conv weight
        off += ci
        bi = b if i == 0 else jnp.zeros_like(b)   # add the bias only once
        yi = _pool_linear(xi, wi, bi, max_tile_s=_max_tile_s)
        out = yi if out is None else out + yi
    return out


# ---------------------------------------------------------------------------
# Pure-JAX reference for verification
# ---------------------------------------------------------------------------

def ref_forward(x, w, b):
    xs = list(x) if isinstance(x, (list, tuple)) else [x]
    pooled = [jnp.mean(xi.astype(jnp.float32), axis=(2, 3)) for xi in xs]
    z = jnp.concatenate(pooled, axis=1)
    return z @ w + b


# ---------------------------------------------------------------------------

if __name__ == "__main__":
    key = jax.random.PRNGKey(0)
    k1, k2, k3, k4, k5, k6 = jax.random.split(key, 6)

    N, c1, c2, H, W = 2, 32, 10, 16, 16
    x = jax.random.normal(k1, (N, c1, H, W), jnp.float32)
    w = 0.1 * jax.random.normal(k2, (c1, c2), jnp.float32)
    b = 0.1 * jax.random.normal(k3, (c2,), jnp.float32)

    out = jax.block_until_ready(classify_forward(x, w, b))
    ref = ref_forward(x, w, b)
    assert out.shape == (N, c2), out.shape
    assert jnp.allclose(out, ref, rtol=1e-4, atol=1e-4), (
        float(jnp.max(jnp.abs(out - ref))))

    # List-input path: pooled features concatenated along channels,
    # different spatial sizes per element (16 + 16 channels == c1).
    xa = jax.random.normal(k4, (N, 16, 16, 16), jnp.float32)
    xb = jax.random.normal(k5, (N, 16, 8, 8), jnp.float32)
    out2 = jax.block_until_ready(classify_forward([xa, xb], w, b))
    ref2 = ref_forward([xa, xb], w, b)
    assert out2.shape == (N, c2), out2.shape
    assert jnp.allclose(out2, ref2, rtol=1e-4, atol=1e-4), (
        float(jnp.max(jnp.abs(out2 - ref2))))

    # Multi-tile / ragged-spatial / megacore-split path: force tile_s=128 so
    # the grid pipeline, in-kernel mask, clamped phantom block and 2-way
    # spatial split are all exercised (H*W = 324 -> 3 ragged tiles of 128).
    x3 = jax.random.normal(k6, (N, c1, 18, 18), jnp.float32)
    out3 = jax.block_until_ready(classify_forward(x3, w, b, _max_tile_s=128))
    ref3 = ref_forward(x3, w, b)
    assert out3.shape == (N, c2), out3.shape
    assert jnp.allclose(out3, ref3, rtol=1e-4, atol=1e-4), (
        float(jnp.max(jnp.abs(out3 - ref3))))

    print("KERNEL_OK")
</pallas_src>

<mosaic_0001>
module attributes {stable_mosaic.version = 11 : i64} {
  func.func @_pool_linear_kernel(%arg0: i32, %arg1: i32, %arg2: i32, %arg3: memref<2x32x256xf32, #tpu.memory_space<vmem>>, %arg4: memref<32x10xf32, #tpu.memory_space<vmem>>, %arg5: memref<1x10xf32, #tpu.memory_space<vmem>>, %arg6: memref<1x2x10xf32, #tpu.memory_space<vmem>>, %arg7: memref<2x32xf32, #tpu.memory_space<vmem>>) attributes {dimension_semantics = [#tpu.dimension_semantics<parallel>, #tpu.dimension_semantics<parallel>, #tpu.dimension_semantics<arbitrary>], iteration_bounds = array<i64: 1, 1, 1>, scalar_prefetch = 0 : i64, scratch_operands = 1 : i64, tpu.core_type = #tpu.core_type<tc>, window_params = [{transform_indices = @transform_0, window_bounds = array<i64: 2, 32, 256>}, {pipeline_mode = #tpu.pipeline_mode<synchronous>, transform_indices = @transform_1, window_bounds = array<i64: 32, 10>}, {pipeline_mode = #tpu.pipeline_mode<synchronous>, transform_indices = @transform_2, window_bounds = array<i64: 1, 10>}, {transform_indices = @transform_3, window_bounds = array<i64: 1, 2, 10>}]} {
    %c0_i32 = arith.constant 0 : i32
    %0 = arith.cmpi eq, %arg2, %c0_i32 : i32
    %1 = arith.extui %0 : i1 to i32
    %c0_i32_0 = arith.constant 0 : i32
    %2 = arith.cmpi ne, %1, %c0_i32_0 : i32
    scf.if %2 {
      %cst_9 = arith.constant 0.000000e+00 : f32
      %11 = vector.broadcast %cst_9 : f32 to vector<2x32xf32>
      %c0_10 = arith.constant 0 : index
      %c0_11 = arith.constant 0 : index
      %12 = vector.load %arg7[%c0_10, %c0_11] : memref<2x32xf32, #tpu.memory_space<vmem>>, vector<2x32xf32>
      tpu.vector_store %arg7[%c0_10, %c0_11], %11 {strides = array<i32>} : memref<2x32xf32, #tpu.memory_space<vmem>>, vector<2x32xf32>,
    } else {
    }
    %c0 = arith.constant 0 : index
    %c0_1 = arith.constant 0 : index
    %c0_2 = arith.constant 0 : index
    %3 = vector.load %arg3[%c0, %c0_1, %c0_2] : memref<2x32x256xf32, #tpu.memory_space<vmem>>, vector<2x32x256xf32>
    %c0_3 = arith.constant 0 : index
    %c0_4 = arith.constant 0 : index
    %4 = vector.load %arg7[%c0_3, %c0_4] : memref<2x32xf32, #tpu.memory_space<vmem>>, vector<2x32xf32>
    %cst = arith.constant dense<0.000000e+00> : vector<2x32xf32>
    %5 = vector.multi_reduction <add>, %3, %cst [2] : vector<2x32x256xf32> to vector<2x32xf32>
    %6 = arith.addf %4, %5 : vector<2x32xf32>
    %c0_5 = arith.constant 0 : index
    %c0_6 = arith.constant 0 : index
    %7 = vector.load %arg7[%c0_5, %c0_6] : memref<2x32xf32, #tpu.memory_space<vmem>>, vector<2x32xf32>
    tpu.vector_store %arg7[%c0_5, %c0_6], %6 {strides = array<i32>} : memref<2x32xf32, #tpu.memory_space<vmem>>, vector<2x32xf32>,
    %c0_i32_7 = arith.constant 0 : i32
    %8 = arith.cmpi eq, %arg2, %c0_i32_7 : i32
    %9 = arith.extui %8 : i1 to i32
    %c0_i32_8 = arith.constant 0 : i32
    %10 = arith.cmpi ne, %9, %c0_i32_8 : i32
    scf.if %10 {
      %c0_9 = arith.constant 0 : index
      %c0_10 = arith.constant 0 : index
      %11 = vector.load %arg7[%c0_9, %c0_10] : memref<2x32xf32, #tpu.memory_space<vmem>>, vector<2x32xf32>
      %cst_11 = arith.constant 3.906250e-03 : f32
      %12 = vector.broadcast %cst_11 : f32 to vector<2x32xf32>
      %13 = arith.mulf %11, %12 : vector<2x32xf32>
      %c0_12 = arith.constant 0 : index
      %c0_13 = arith.constant 0 : index
      %14 = vector.load %arg4[%c0_12, %c0_13] : memref<32x10xf32, #tpu.memory_space<vmem>>, vector<32x10xf32>
      %cst_14 = arith.constant dense<0.000000e+00> : vector<2x10xf32>
      %15 = tpu.matmul %13, %14, %cst_14 {dimension_numbers = #tpu.dot_dimension_numbers<[1], [0], [0], [1], [0, 0, 1, 1], [], []>} : vector<2x32xf32>, vector<32x10xf32>, vector<2x10xf32> -> vector<2x10xf32>
      %c0_i32_15 = arith.constant 0 : i32
      %16 = arith.cmpi eq, %arg0, %c0_i32_15 : i32
      %cst_16 = arith.constant 1.000000e+00 : f32
      %cst_17 = arith.constant 0.000000e+00 : f32
      %17 = arith.select %16, %cst_16, %cst_17 : f32
      %c0_18 = arith.constant 0 : index
      %c0_19 = arith.constant 0 : index
      %18 = vector.load %arg5[%c0_18, %c0_19] : memref<1x10xf32, #tpu.memory_space<vmem>>, vector<1x10xf32>
      %19 = vector.broadcast %17 : f32 to vector<1x10xf32>
      %20 = arith.mulf %19, %18 : vector<1x10xf32>
      %21 = vector.broadcast %20 : vector<1x10xf32> to vector<2x10xf32>
      %22 = arith.addf %15, %21 : vector<2x10xf32>
      %c0_20 = arith.constant 0 : index
      %c0_21 = arith.constant 0 : index
      %c0_22 = arith.constant 0 : index
      %23 = vector.load %arg6[%c0_20, %c0_21, %c0_22] : memref<1x2x10xf32, #tpu.memory_space<vmem>>, vector<1x2x10xf32>
      %24 = vector.shape_cast %23 : vector<1x2x10xf32> to vector<2x10xf32>
      %25 = vector.shape_cast %22 : vector<2x10xf32> to vector<1x2x10xf32>
      tpu.vector_store %arg6[%c0_20, %c0_21, %c0_22], %25 {strides = array<i32>} : memref<1x2x10xf32, #tpu.memory_space<vmem>>, vector<1x2x10xf32>,
    } else {
    }
    return
  }
  func.func @transform_0(%arg0: i32, %arg1: i32, %arg2: i32) -> (i32, i32, i32) {
    %c1_i32 = arith.constant 1 : i32
    %0 = arith.muli %arg0, %c1_i32 : i32
    %1 = arith.addi %0, %arg2 : i32
    %c0_i32 = arith.constant 0 : i32
    %2 = arith.minsi %1, %c0_i32 : i32
    %c0_i32_0 = arith.constant 0 : i32
    %c0_i32_1 = arith.constant 0 : i32
    return %arg1, %c0_i32_0, %2 : i32, i32, i32
  }
  func.func @transform_1(%arg0: i32, %arg1: i32, %arg2: i32) -> (i32, i32) {
    %c0_i32 = arith.constant 0 : i32
    %c0_i32_0 = arith.constant 0 : i32
    %c0_i32_1 = arith.constant 0 : i32
    return %c0_i32, %c0_i32_0 : i32, i32
  }
  func.func @transform_2(%arg0: i32, %arg1: i32, %arg2: i32) -> (i32, i32) {
    %c0_i32 = arith.constant 0 : i32
    %c0_i32_0 = arith.constant 0 : i32
    %c0_i32_1 = arith.constant 0 : i32
    return %c0_i32, %c0_i32_0 : i32, i32
  }
  func.func @transform_3(%arg0: i32, %arg1: i32, %arg2: i32) -> (i32, i32, i32) {
    %c0_i32 = arith.constant 0 : i32
    %c0_i32_0 = arith.constant 0 : i32
    return %arg0, %arg1, %c0_i32 : i32, i32, i32
  }
}

</mosaic_0001>

<llo_original>
// kernel: tpu_custom_call.1
$region0: #{tpu_custom_call.1}
  #allocation0 [shape = 'u32[]', space=smem, size = 0x4, offset = 0x4, fixed_abs, tag = 'smem constant byte address 0x4 - core index']
  #allocation1 [shape = 'u32[144,128]{1,0:T(1,128)}', space=vmem, size = 0x12000, scoped, tag = 'internal scratch']
  #allocation2 [shape = 'f32[2,32]{1,0:T(2,128)}', space=vmem, size = 0x400, scoped, tag = 'scratch operand']
  %s0 = inlined_call_operand.hbm [shape: f32[2,32,256], index: 0, kind: input, shape index: {}]
  %s1 = inlined_call_operand.vmem [shape: f32[32,10], index: 1, kind: input, shape index: {}]
  %s2 = inlined_call_operand.vmem [shape: f32[1,10], index: 2, kind: input, shape index: {}]
  %s3 = inlined_call_operand.hbm [shape: f32[1,2,10], index: 3, kind: output, shape index: {}]
  %s4 = sld [smem:[#allocation0]]
  $region34: #{tpu_custom_call.1} parent=0
    _
  %s6 = ssub.s32 1, %s4
  %s7 = scalar_select 0, %s6, %s4
  $region1: #{tpu_custom_call.1} parent=0
    #allocation3 [shape = 'u8[65536]{0}', space=vmem, size = 0x10000, scoped, tag = 'input window, operand 0, single buffered']
    #allocation4 [shape = 's32[1]{0}', space=sflag, size = 0x4, scoped, tag = 'scoped memory for tpu_custom_call.1']
    #allocation5 [shape = 's32[1]{0}', space=sflag, size = 0x4, scoped, tag = 'scoped memory for tpu_custom_call.1']
    #allocation6 [shape = 'u8[1024]{0}', space=vmem, size = 0x400, scoped, tag = 'output window, operand 0, single buffered']
    %8 = vsyncpa [#allocation4], 0
    %9 = vsyncpa [#allocation5], 0
    // Predicated region
    $region2: #{tpu_custom_call.1} parent=1 // pred_check
      _
    $region3: #{tpu_custom_call.1} parent=1 // pred_check_branch
      %11 = sbr.rel (0) target = $region5
    $region4: #{tpu_custom_call.1} parent=1 // pred_region
      %s12 = sadd.s32 0, 0
      %p13 = scmp.lt.s32.totalorder %s12, 0
      %s14 = scalar_select %p13, %s12, 0
      %s15 = smul.u32 2, %s14
      %s17 = ssub.s32 2048, 2048
      %18 = vsyncadd [#allocation4], %s17
      %s19 = smul.addr %s15, 128
      %s20 = scalar_lea.hbm %s0, %s19
      %s21 = sshll.u32 [#allocation3], 4
      %s22 = int_to_ptr.vmem [resolvable:$true] %s21
      %27 = dma.hbm_to_vmem [thread:$0]  %s20, 2048, %s22, [#allocation4], 256, 256, 16
    $region5: #{tpu_custom_call.1} parent=1 // pred_fallthru
      _
    // Predicated region
    $region6: #{tpu_custom_call.1} parent=1 // pred_check
      _
    $region7: #{tpu_custom_call.1} parent=1 // pred_check_branch
      %29 = sbr.rel (0) target = $region9
    $region8: #{tpu_custom_call.1} parent=1 // pred_region
      _
    $region9: #{tpu_custom_call.1} parent=1 // pred_fallthru
      _
    // Predicated region
    $region10: #{tpu_custom_call.1} parent=1 // pred_check
      _
    $region11: #{tpu_custom_call.1} parent=1 // pred_check_branch
      %31 = sbr.rel (0) target = $region13
    $region12: #{tpu_custom_call.1} parent=1 // pred_region
      _
    $region13: #{tpu_custom_call.1} parent=1 // pred_fallthru
      _
    // Predicated region
    $region14: #{tpu_custom_call.1} parent=1 // pred_check
      _
    $region15: #{tpu_custom_call.1} parent=1 // pred_check_branch
      %33 = sbr.rel (0) target = $region17
    $region16: #{tpu_custom_call.1} parent=1 // pred_region
      %34 = dma.done [#allocation4], 2048
    $region17: #{tpu_custom_call.1} parent=1 // pred_fallthru
      _
    %s35 = sadd.s32 0, 0
    %p36 = scmp.lt.s32.totalorder %s35, 0
    %s37 = scalar_select %p36, %s35, 0
    %s38 = smul.u32 2, %s37
    %p39 = scmp.eq.s32.totalorder 0, 0
    // Predicated region
    $region18: #{tpu_custom_call.1} parent=1 // pred_check
      %p40 = pneg %p39
    $region19: #{tpu_custom_call.1} parent=1 // pred_check_branch
      %42 = sbr.rel (%p40) target = $region21
    $region20: #{tpu_custom_call.1} parent=1 // pred_region
      %vm43 = vcmask 254976
      %44 = vst.msk [vmem:[#allocation2] sm:$0x3] %vm43, 0.0
    $region21: #{tpu_custom_call.1} parent=1 // pred_fallthru
      _
    %v45 = vld [vmem:[#allocation3] sm:$0xff]
    %v46 = vld [vmem:[#allocation3 + $0x8] sm:$0xff]
    %v47 = vld [vmem:[#allocation3 + $0x10] sm:$0xff]
    %v48 = vld [vmem:[#allocation3 + $0x18] sm:$0xff]
    %v49 = vld [vmem:[#allocation3 + $0x20] sm:$0xff]
    %v50 = vld [vmem:[#allocation3 + $0x28] sm:$0xff]
    %v51 = vld [vmem:[#allocation3 + $0x30] sm:$0xff]
    %v52 = vld [vmem:[#allocation3 + $0x38] sm:$0xff]
    %v53 = vld [vmem:[#allocation3 + $0x40] sm:$0xff]
    %v54 = vld [vmem:[#allocation3 + $0x48] sm:$0xff]
    %v55 = vld [vmem:[#allocation3 + $0x50] sm:$0xff]
    %v56 = vld [vmem:[#allocation3 + $0x58] sm:$0xff]
    %v57 = vld [vmem:[#allocation3 + $0x60] sm:$0xff]
    %v58 = vld [vmem:[#allocation3 + $0x68] sm:$0xff]
    %v59 = vld [vmem:[#allocation3 + $0x70] sm:$0xff]
    %v60 = vld [vmem:[#allocation3 + $0x78] sm:$0xff]
    %v61 = vld [vmem:[#allocation2] sm:$0x3]
    %v62 = vadd.f32 %v45, %v46
    %63 = vadd.xlane.f32.xlu0 %v62
    %v64 = vpop.xlane.xlu0 %63
    %v65 = vadd.f32 %v47, %v48
    %66 = vadd.xlane.f32.xlu0 %v65
    %v67 = vpop.xlane.xlu0 %66
    %v68 = vadd.f32 %v49, %v50
    %69 = vadd.xlane.f32.xlu0 %v68
    %v70 = vpop.xlane.xlu0 %69
    %v71 = vadd.f32 %v51, %v52
    %72 = vadd.xlane.f32.xlu0 %v71
    %v73 = vpop.xlane.xlu0 %72
    %v74 = vadd.f32 %v53, %v54
    %75 = vadd.xlane.f32.xlu0 %v74
    %v76 = vpop.xlane.xlu0 %75
    %v77 = vadd.f32 %v55, %v56
    %78 = vadd.xlane.f32.xlu0 %v77
    %v79 = vpop.xlane.xlu0 %78
    %v80 = vadd.f32 %v57, %v58
    %81 = vadd.xlane.f32.xlu0 %v80
    %v82 = vpop.xlane.xlu0 %81
    %v83 = vadd.f32 %v59, %v60
    %84 = vadd.xlane.f32.xlu0 %v83
    %v85 = vpop.xlane.xlu0 %84
    %v94 = vlaneseq
    %v95 = vand.u32 %v94, 127
    %v96 = vlaneseq
    %v97 = vshrl.u32 %v96, 7
    %v98 = vsub.s32 %v95, %v97
    %v99 = vrot.slane %v64, %v98
    %v100 = vadd.s32 %v95, 4294967288
    %v101 = vlaneseq
    %v102 = vshrl.u32 %v101, 7
    %v103 = vsub.s32 %v100, %v102
    %v104 = vrot.slane %v67, %v103
    %vm105 = vcmask 130112
    %v106 = vsel %vm105, %v104, %v99
    %v107 = vadd.s32 %v95, 4294967280
    %v108 = vlaneseq
    %v109 = vshrl.u32 %v108, 7
    %v110 = vsub.s32 %v107, %v109
    %v111 = vrot.slane %v70, %v110
    %vm112 = vcmask 195712
    %v113 = vsel %vm112, %v111, %v106
    %v114 = vadd.s32 %v95, 4294967272
    %v115 = vlaneseq
    %v116 = vshrl.u32 %v115, 7
    %v117 = vsub.s32 %v114, %v116
    %v118 = vrot.slane %v73, %v117
    %vm119 = vcmask 261312
    %v120 = vsel %vm119, %v118, %v113
    %v121 = vlaneseq
    %v122 = vshrl.u32 %v121, 7
    %v123 = vsub.s32 %v95, %v122
    %v124 = vrot.slane %v76, %v123
    %v125 = vlaneseq
    %v126 = vshrl.u32 %v125, 7
    %v127 = vsub.s32 %v100, %v126
    %v128 = vrot.slane %v79, %v127
    %v129 = vsel %vm105, %v128, %v124
    %v130 = vlaneseq
    %v131 = vshrl.u32 %v130, 7
    %v132 = vsub.s32 %v107, %v131
    %v133 = vrot.slane %v82, %v132
    %v134 = vsel %vm112, %v133, %v129
    %v135 = vlaneseq
    %v136 = vshrl.u32 %v135, 7
    %v137 = vsub.s32 %v114, %v136
    %v138 = vrot.slane %v85, %v137
    %v139 = vsel %vm119, %v138, %v134
    %vm140 = vcmask 1041409
    %v141 = vsel %vm140, %v139, %v120
    %v143 = vadd.f32 %v61, %v141
    %vm144 = vcmask 254976
    %145 = vst.msk [vmem:[#allocation2] sm:$0x3] %vm144, %v143
    // Predicated region
    $region22: #{tpu_custom_call.1} parent=1 // pred_check
      %p146 = pneg %p39
    $region23: #{tpu_custom_call.1} parent=1 // pred_check_branch
      %148 = sbr.rel (%p146) target = $region25
    $region24: #{tpu_custom_call.1} parent=1 // pred_region
      %v149 = vld [vmem:[#allocation2] sm:$0x3]
      %v150 = vmul.f32 %v149, 0.00390625
      %v151 = vld [vmem:[%s1] sm:$0xff]
      %v152 = vld [vmem:[%s1 + $0x8] sm:$0xff]
      %v153 = vld [vmem:[%s1 + $0x10] sm:$0xff]
      %v154 = vld [vmem:[%s1 + $0x18] sm:$0xff]
      %p155 = scmp.eq.s32.totalorder 0, 0
      %s156 = scalar_select %p155, 1.0, 0.0
      %v157 = vld [vmem:[%s2] sm:$0x1]
      %v158 = vstv %s156
      %v159 = vmul.f32 %v158, %v157
      %v161 = vlaneseq
      %v162 = vshrl.u32 %v161, 7
      %v163 = vsub.s32 0, %v162
      %v164 = vrot.slane %v159, %v163
      %vm166 = vcmask 261120
      %v168 = vsel %vm166, %v150, 0
      %170 = vmatprep.subr.mxu0 0.0
      %171 = vmatpush1.msra.mxu0 0.0
      %172 = vmatprep.subr.mxu0 0.0
      %173 = vmatpush1.msra.mxu0 0.0
      %174 = vmatprep.subr.mxu0 0.0
      %175 = vmatpush1.msra.mxu0 0.0
      %176 = vmatprep.subr.mxu0 0.0
      %177 = vmatpush1.msra.mxu0 0.0
      %178 = vmatprep.subr.mxu0 0.0
      %179 = vmatpush1.msra.mxu0 0.0
      %180 = vmatprep.subr.mxu0 0.0
      %181 = vmatpush1.msra.mxu0 0.0
      %182 = vmatprep.subr.mxu0 0.0
      %183 = vmatpush1.msra.mxu0 0.0
      %184 = vmatprep.subr.mxu0 0.0
      %185 = vmatpush1.msra.mxu0 0.0
      %186 = vmatprep.subr.mxu0 0.0
      %187 = vmatpush1.msra.mxu0 0.0
      %188 = vmatprep.subr.mxu0 0.0
      %189 = vmatpush1.msra.mxu0 0.0
      %190 = vmatprep.subr.mxu0 0.0
      %191 = vmatpush1.msra.mxu0 0.0
      %192 = vmatprep.subr.mxu0 0.0
      %193 = vmatpush1.msra.mxu0 0.0
      %194 = vmatprep.subr.mxu0 0.0
      %195 = vmatpush1.msra.mxu0 %v154
      %196 = vmatprep.subr.mxu0 0.0
      %197 = vmatpush1.msra.mxu0 %v153
      %198 = vmatprep.subr.mxu0 0.0
      %199 = vmatpush1.msra.mxu0 %v152
      %200 = vmatprep.subr.mxu0 0.0
      %201 = vmatpush1.msra.mxu0 %v151
      %202 = vmatprep.subr.mxu0 0.0
      %203 = vmatpush2.msra.mxu0 0.0
      %204 = vmatprep.subr.mxu0 0.0
      %205 = vmatpush2.msra.mxu0 0.0
      %206 = vmatprep.subr.mxu0 0.0
      %207 = vmatpush2.msra.mxu0 0.0
      %208 = vmatprep.subr.mxu0 0.0
      %209 = vmatpush2.msra.mxu0 0.0
      %210 = vmatprep.subr.mxu0 0.0
      %211 = vmatpush2.msra.mxu0 0.0
      %212 = vmatprep.subr.mxu0 0.0
      %213 = vmatpush2.msra.mxu0 0.0
      %214 = vmatprep.subr.mxu0 0.0
      %215 = vmatpush2.msra.mxu0 0.0
      %216 = vmatprep.subr.mxu0 0.0
      %217 = vmatpush2.msra.mxu0 0.0
      %218 = vmatprep.subr.mxu0 0.0
      %219 = vmatpush2.msra.mxu0 0.0
      %220 = vmatprep.subr.mxu0 0.0
      %221 = vmatpush2.msra.mxu0 0.0
      %222 = vmatprep.subr.mxu0 0.0
      %223 = vmatpush2.msra.mxu0 0.0
      %224 = vmatprep.subr.mxu0 0.0
      %225 = vmatpush2.msra.mxu0 0.0
      %226 = vmatprep.subr.mxu0 0.0
      %227 = vmatpush2.msra.mxu0 0.0
      %228 = vmatprep.subr.mxu0 0.0
      %229 = vmatpush2.msra.mxu0 0.0
      %230 = vmatprep.subr.mxu0 0.0
      %231 = vmatpush2.msra.mxu0 0.0
      %232 = vmatprep.subr.mxu0 0.0
      %233 = vmatpush2.msra.mxu0 0.0
      %234 = vmatprep.mubr.f32.mxu0 0.0
      %235 = vmatmul.mubr.f32.gmra.mxu0 %v168
      %v236 = vpop.f32.mrf.mxu0
      %v237 = vadd.f32 %v164, %v236
      %v238 = vpop.f32.mrf.mxu0
      %239 = vdwg.mxu0
      %vm240 = vcmask 74752
      %241 = vst.msk [vmem:[#allocation6] sm:$0x3] %vm240, %v237
    $region25: #{tpu_custom_call.1} parent=1 // pred_fallthru
      _
    // Predicated region
    $region26: #{tpu_custom_call.1} parent=1 // pred_check
      _
    $region27: #{tpu_custom_call.1} parent=1 // pred_check_branch
      %243 = sbr.rel (0) target = $region29
    $region28: #{tpu_custom_call.1} parent=1 // pred_region
      %s245 = ssub.s32 32, 32
      %246 = vsyncadd [#allocation5], %s245
      %s248 = sshll.u32 [#allocation6], 4
      %s249 = int_to_ptr.vmem [resolvable:$true] %s248
      %251 = dma.vmem_to_hbm [thread:$0]  %s249, 32, %s3, [#allocation5]
    $region29: #{tpu_custom_call.1} parent=1 // pred_fallthru
      _
    // Predicated region
    $region30: #{tpu_custom_call.1} parent=1 // pred_check
      _
    $region31: #{tpu_custom_call.1} parent=1 // pred_check_branch
      %253 = sbr.rel (0) target = $region33
    $region32: #{tpu_custom_call.1} parent=1 // pred_region
      %254 = dma.done [#allocation5], 32
    $region33: #{tpu_custom_call.1} parent=1 // pred_fallthru
      _
    %255 = vsyncpa [#allocation4], 1
    %256 = vsyncpa [#allocation5], 1

</llo_original>
